<compile_context>
chip_gen: v6e
topology: v6e:2x2x1
jax: 0.10.0
libtpu: 0.0.40
codegen_flags: <defaults>
</compile_context>

<pallas_src>
import jax
import jax.numpy as jnp
from jax import lax
from jax.experimental import pallas as pl
from jax.experimental.pallas import tpu as pltpu


def feedforward_kernel(x_ref, bn_s_ref, bn_b_ref, nf_ref, nl_ref,
                       w1_ref, b1_ref, w2_ref, b2_ref, o_ref):
    """One grid step = TM = nb*L rows (nb whole sequences), channels on the 128-lane axis."""
    x = x_ref[...]                                        # (TM, Cp) f32
    xn = x * bn_s_ref[...] + bn_b_ref[...]                # BatchNorm1d (eval) folded into scale/bias
    m = x.shape[0]
    cdt = w1_ref.dtype                                    # MXU operand dtype (f32 or bf16)
    nf = nf_ref[...].astype(cdt)                          # (TM, 1): 0.0 on the first row of a sequence
    nl = nl_ref[...].astype(cdt)                          # (TM, 1): 0.0 on the last row of a sequence

    def conv3(inp_f32, w_ref, b_ref):
        # Conv1d(kernel=3, padding=1) as ONE im2col matmul: columns = [x[l-1] | x[l] | x[l+1]],
        # weight rows pre-arranged to match. Shifts are XLU sublane rolls + boundary masks so taps
        # never bleed across sequence/batch boundaries (equivalent to PyTorch zero padding post-BN).
        w = w_ref[...]
        inp = inp_f32.astype(cdt)                         # cast once, before shift/concat
        prev = pltpu.roll(inp, 1, axis=0) * nf            # row i <- row i-1, zeroed at sequence starts
        nxt = pltpu.roll(inp, m - 1, axis=0) * nl         # row i <- row i+1, zeroed at sequence ends
        cat = jnp.concatenate([prev, inp, nxt], axis=-1)  # (TM, 3*Cin_p), lane-aligned sub-blocks
        acc = jnp.dot(cat, w, preferred_element_type=jnp.float32)
        return acc + b_ref[...]

    h = jnp.maximum(conv3(xn, w1_ref, b1_ref), 0.0)       # Conv1d(C->2C) + Dropout(identity) + ReLU
    y = conv3(h, w2_ref, b2_ref)                          # Conv1d(2C->C) + Dropout(identity)
    o_ref[...] = (x + y).astype(o_ref.dtype)              # skip connection on pre-BN x


def _round_up(v, m):
    return (v + m - 1) // m * m


def _pick_block_batches(n, seq_len, target_rows):
    """Largest divisor nb of n with nb*seq_len <= target_rows, honoring the (8,128) rule:
    tm = nb*seq_len must be divisible by 8, or nb == n (block spans the full row axis)."""
    cands = [nb for nb in range(1, n + 1)
             if n % nb == 0 and ((nb * seq_len) % 8 == 0 or nb == n)]
    fit = [nb for nb in cands if nb * seq_len <= max(target_rows, seq_len)]
    return max(fit) if fit else min(cands)


def feedforward(x_ncl, params, eps=1e-5, compute_dtype=jnp.float32,
                target_block_rows=512):
    """x_ncl: (N, C, L) float32 (PyTorch Conv1d layout). Returns (N, C, L)."""
    N, C, L = x_ncl.shape
    C2 = 2 * C
    Cp = _round_up(C, 128)               # lane-dense channel padding
    C2p = _round_up(C2, 128)
    f32 = jnp.float32

    # ---- fold BatchNorm1d (eval mode) into per-channel scale/bias (padded channels -> 0)
    scale = params["gamma"] / jnp.sqrt(params["running_var"] + eps)
    bias = params["beta"] - params["running_mean"] * scale
    bn_scale = jnp.zeros((1, Cp), f32).at[0, :C].set(scale)
    bn_bias = jnp.zeros((1, Cp), f32).at[0, :C].set(bias)

    # ---- conv weights as one (3*Cin_p, Cout_p) im2col matrix per conv
    # rows [0:Cin_p)->tap k=0 (x[l-1]), [Cin_p:2Cin_p)->k=1 (x[l]), [2Cin_p:3Cin_p)->k=2 (x[l+1])
    w1_t = jnp.transpose(params["w1"], (2, 1, 0))     # (3, C, 2C)
    w1_cat = (jnp.zeros((3, Cp, C2p), f32).at[:, :C, :C2].set(w1_t)
              .reshape(3 * Cp, C2p).astype(compute_dtype))
    w2_t = jnp.transpose(params["w2"], (2, 1, 0))     # (3, 2C, C)
    w2_cat = (jnp.zeros((3, C2p, Cp), f32).at[:, :C2, :C].set(w2_t)
              .reshape(3 * C2p, Cp).astype(compute_dtype))
    b1 = jnp.zeros((1, C2p), f32).at[0, :C2].set(params["b1"])
    b2 = jnp.zeros((1, Cp), f32).at[0, :C].set(params["b2"])

    # ---- (N, C, L) -> (N*L, Cp): channels on lanes, batch*length on sublanes
    # TODO(synk): accepting an NLC input upstream would remove these two boundary transposes.
    x_nlc = jnp.transpose(x_ncl, (0, 2, 1)).astype(f32).reshape(N * L, C)
    x_flat = x_nlc if Cp == C else jnp.zeros((N * L, Cp), f32).at[:, :C].set(x_nlc)

    # ---- rows per grid step: nb whole sequences (conv taps stay inside each sequence)
    nb = _pick_block_batches(N, L, target_block_rows)
    tm = nb * L
    grid = (N * L // tm,)

    # 0/1 masks marking rows that have a valid previous / next row inside their own sequence.
    # Every block starts at a sequence boundary, so one (tm, 1) mask serves all grid steps
    # (constant block index -> loaded once, resident across the whole grid).
    l_idx = jnp.arange(tm, dtype=jnp.int32) % L
    not_first = (l_idx != 0).astype(f32).reshape(tm, 1)
    not_last = (l_idx != L - 1).astype(f32).reshape(tm, 1)

    out_flat = pl.pallas_call(
        feedforward_kernel,
        out_shape=jax.ShapeDtypeStruct((N * L, Cp), f32),
        grid_spec=pltpu.PrefetchScalarGridSpec(
            num_scalar_prefetch=0,
            grid=grid,
            in_specs=[
                pl.BlockSpec((tm, Cp), lambda i: (i, 0)),        # x rows
                pl.BlockSpec((1, Cp), lambda i: (0, 0)),         # bn scale
                pl.BlockSpec((1, Cp), lambda i: (0, 0)),         # bn bias
                pl.BlockSpec((tm, 1), lambda i: (0, 0)),         # not-first-row mask
                pl.BlockSpec((tm, 1), lambda i: (0, 0)),         # not-last-row mask
                pl.BlockSpec((3 * Cp, C2p), lambda i: (0, 0)),   # conv1 im2col weights
                pl.BlockSpec((1, C2p), lambda i: (0, 0)),        # conv1 bias
                pl.BlockSpec((3 * C2p, Cp), lambda i: (0, 0)),   # conv2 im2col weights
                pl.BlockSpec((1, Cp), lambda i: (0, 0)),         # conv2 bias
            ],
            out_specs=pl.BlockSpec((tm, Cp), lambda i: (i, 0)),
        ),
        compiler_params=pltpu.CompilerParams(
            dimension_semantics=("parallel",)),
    )(x_flat, bn_scale, bn_bias, not_first, not_last, w1_cat, b1, w2_cat, b2)

    out = out_flat[:, :C].reshape(N, L, C)
    return jnp.transpose(out, (0, 2, 1))               # back to (N, C, L)


def reference(x_ncl, params, eps=1e-5):
    """Pure-JAX reference matching PyTorch eval-mode forward."""
    gamma = params["gamma"][None, :, None]
    beta = params["beta"][None, :, None]
    rmean = params["running_mean"][None, :, None]
    rvar = params["running_var"][None, :, None]
    xn = (x_ncl - rmean) / jnp.sqrt(rvar + eps) * gamma + beta
    dn = ("NCH", "OIH", "NCH")
    h = lax.conv_general_dilated(xn, params["w1"], window_strides=(1,),
                                 padding=((1, 1),), dimension_numbers=dn)
    h = jnp.maximum(h + params["b1"][None, :, None], 0.0)
    y = lax.conv_general_dilated(h, params["w2"], window_strides=(1,),
                                 padding=((1, 1),), dimension_numbers=dn)
    y = y + params["b2"][None, :, None]
    return x_ncl + y


def make_params(key, conv_dim, kernel_size=3):
    ks = jax.random.split(key, 8)
    C, C2, K = conv_dim, 2 * conv_dim, kernel_size
    return {
        "gamma": jax.random.normal(ks[0], (C,), jnp.float32) * 0.1 + 1.0,
        "beta": jax.random.normal(ks[1], (C,), jnp.float32) * 0.1,
        "running_mean": jax.random.normal(ks[2], (C,), jnp.float32) * 0.1,
        "running_var": jax.random.uniform(ks[3], (C,), jnp.float32, 0.5, 1.5),
        "w1": jax.random.normal(ks[4], (C2, C, K), jnp.float32) * 0.05,
        "b1": jax.random.normal(ks[5], (C2,), jnp.float32) * 0.05,
        "w2": jax.random.normal(ks[6], (C, C2, K), jnp.float32) * 0.05,
        "b2": jax.random.normal(ks[7], (C,), jnp.float32) * 0.05,
    }


if __name__ == "__main__":
    # Small but representative shapes: batch=4, conv_dim (channels)=64, sequence length=16.
    N, C, L = 4, 64, 16
    key = jax.random.PRNGKey(0)
    kx, kp = jax.random.split(key)
    x = jax.random.normal(kx, (N, C, L), jnp.float32)   # PyTorch-style (N, C, L)
    params = make_params(kp, conv_dim=C, kernel_size=3)

    ref = jax.block_until_ready(reference(x, params))

    # f32-operand MXU path (tight tolerance).
    out = jax.block_until_ready(feedforward(x, params, compute_dtype=jnp.float32))
    assert out.shape == (N, C, L)
    assert jnp.allclose(out, ref, rtol=1e-3, atol=1e-3), "f32 kernel mismatch vs JAX reference"

    # bf16-operand MXU path (v6e/v7x native), f32 accumulation -> looser tolerance.
    out_bf = jax.block_until_ready(feedforward(x, params, compute_dtype=jnp.bfloat16))
    assert jnp.allclose(out_bf, ref, rtol=5e-2, atol=5e-2), "bf16 kernel mismatch vs JAX reference"

    print("KERNEL_OK")
</pallas_src>

<mosaic_0001>
module attributes {stable_mosaic.version = 11 : i64} {
  func.func @feedforward_kernel(%arg0: i32, %arg1: memref<64x128xf32, #tpu.memory_space<vmem>>, %arg2: memref<1x128xf32, #tpu.memory_space<vmem>>, %arg3: memref<1x128xf32, #tpu.memory_space<vmem>>, %arg4: memref<64x1xf32, #tpu.memory_space<vmem>>, %arg5: memref<64x1xf32, #tpu.memory_space<vmem>>, %arg6: memref<384x128xf32, #tpu.memory_space<vmem>>, %arg7: memref<1x128xf32, #tpu.memory_space<vmem>>, %arg8: memref<384x128xf32, #tpu.memory_space<vmem>>, %arg9: memref<1x128xf32, #tpu.memory_space<vmem>>, %arg10: memref<64x128xf32, #tpu.memory_space<vmem>>) attributes {dimension_semantics = [#tpu.dimension_semantics<parallel>], iteration_bounds = array<i64: 1>, scalar_prefetch = 0 : i64, scratch_operands = 0 : i64, tpu.core_type = #tpu.core_type<tc>, window_params = [{transform_indices = @transform_0, window_bounds = array<i64: 64, 128>}, {pipeline_mode = #tpu.pipeline_mode<synchronous>, transform_indices = @transform_1, window_bounds = array<i64: 1, 128>}, {pipeline_mode = #tpu.pipeline_mode<synchronous>, transform_indices = @transform_2, window_bounds = array<i64: 1, 128>}, {pipeline_mode = #tpu.pipeline_mode<synchronous>, transform_indices = @transform_3, window_bounds = array<i64: 64, 1>}, {pipeline_mode = #tpu.pipeline_mode<synchronous>, transform_indices = @transform_4, window_bounds = array<i64: 64, 1>}, {pipeline_mode = #tpu.pipeline_mode<synchronous>, transform_indices = @transform_5, window_bounds = array<i64: 384, 128>}, {pipeline_mode = #tpu.pipeline_mode<synchronous>, transform_indices = @transform_6, window_bounds = array<i64: 1, 128>}, {pipeline_mode = #tpu.pipeline_mode<synchronous>, transform_indices = @transform_7, window_bounds = array<i64: 384, 128>}, {pipeline_mode = #tpu.pipeline_mode<synchronous>, transform_indices = @transform_8, window_bounds = array<i64: 1, 128>}, {transform_indices = @transform_9, window_bounds = array<i64: 64, 128>}]} {
    %c0 = arith.constant 0 : index
    %c0_0 = arith.constant 0 : index
    %0 = vector.load %arg1[%c0, %c0_0] : memref<64x128xf32, #tpu.memory_space<vmem>>, vector<64x128xf32>
    %c0_1 = arith.constant 0 : index
    %c0_2 = arith.constant 0 : index
    %1 = vector.load %arg2[%c0_1, %c0_2] : memref<1x128xf32, #tpu.memory_space<vmem>>, vector<1x128xf32>
    %2 = vector.broadcast %1 : vector<1x128xf32> to vector<64x128xf32>
    %3 = arith.mulf %0, %2 : vector<64x128xf32>
    %c0_3 = arith.constant 0 : index
    %c0_4 = arith.constant 0 : index
    %4 = vector.load %arg3[%c0_3, %c0_4] : memref<1x128xf32, #tpu.memory_space<vmem>>, vector<1x128xf32>
    %5 = vector.broadcast %4 : vector<1x128xf32> to vector<64x128xf32>
    %6 = arith.addf %3, %5 : vector<64x128xf32>
    %c0_5 = arith.constant 0 : index
    %c0_6 = arith.constant 0 : index
    %7 = vector.load %arg4[%c0_5, %c0_6] : memref<64x1xf32, #tpu.memory_space<vmem>>, vector<64x1xf32>
    %c0_7 = arith.constant 0 : index
    %c0_8 = arith.constant 0 : index
    %8 = vector.load %arg5[%c0_7, %c0_8] : memref<64x1xf32, #tpu.memory_space<vmem>>, vector<64x1xf32>
    %c0_9 = arith.constant 0 : index
    %c0_10 = arith.constant 0 : index
    %9 = vector.load %arg6[%c0_9, %c0_10] : memref<384x128xf32, #tpu.memory_space<vmem>>, vector<384x128xf32>
    %c1_i32 = arith.constant 1 : i32
    %10 = tpu.dynamic_rotate %6 by %c1_i32 dim 0 : vector<64x128xf32>, i32 -> vector<64x128xf32>
    %11 = vector.broadcast %7 : vector<64x1xf32> to vector<64x128xf32>
    %12 = arith.mulf %10, %11 : vector<64x128xf32>
    %c63_i32 = arith.constant 63 : i32
    %13 = tpu.dynamic_rotate %6 by %c63_i32 dim 0 : vector<64x128xf32>, i32 -> vector<64x128xf32>
    %14 = vector.broadcast %8 : vector<64x1xf32> to vector<64x128xf32>
    %15 = arith.mulf %13, %14 : vector<64x128xf32>
    %16 = tpu.concatenate %12, %6, %15 in 1 : vector<64x128xf32>, vector<64x128xf32>, vector<64x128xf32> -> vector<64x384xf32>
    %cst = arith.constant dense<0.000000e+00> : vector<64x128xf32>
    %17 = tpu.matmul %16, %9, %cst {dimension_numbers = #tpu.dot_dimension_numbers<[1], [0], [0], [1], [0, 0, 1, 1], [], []>} : vector<64x384xf32>, vector<384x128xf32>, vector<64x128xf32> -> vector<64x128xf32>
    %c0_11 = arith.constant 0 : index
    %c0_12 = arith.constant 0 : index
    %18 = vector.load %arg7[%c0_11, %c0_12] : memref<1x128xf32, #tpu.memory_space<vmem>>, vector<1x128xf32>
    %19 = vector.broadcast %18 : vector<1x128xf32> to vector<64x128xf32>
    %20 = arith.addf %17, %19 : vector<64x128xf32>
    %cst_13 = arith.constant 0.000000e+00 : f32
    %21 = vector.broadcast %cst_13 : f32 to vector<64x128xf32>
    %22 = arith.maximumf %20, %21 : vector<64x128xf32>
    %c0_14 = arith.constant 0 : index
    %c0_15 = arith.constant 0 : index
    %23 = vector.load %arg8[%c0_14, %c0_15] : memref<384x128xf32, #tpu.memory_space<vmem>>, vector<384x128xf32>
    %c1_i32_16 = arith.constant 1 : i32
    %24 = tpu.dynamic_rotate %22 by %c1_i32_16 dim 0 : vector<64x128xf32>, i32 -> vector<64x128xf32>
    %25 = vector.broadcast %7 : vector<64x1xf32> to vector<64x128xf32>
    %26 = arith.mulf %24, %25 : vector<64x128xf32>
    %c63_i32_17 = arith.constant 63 : i32
    %27 = tpu.dynamic_rotate %22 by %c63_i32_17 dim 0 : vector<64x128xf32>, i32 -> vector<64x128xf32>
    %28 = vector.broadcast %8 : vector<64x1xf32> to vector<64x128xf32>
    %29 = arith.mulf %27, %28 : vector<64x128xf32>
    %30 = tpu.concatenate %26, %22, %29 in 1 : vector<64x128xf32>, vector<64x128xf32>, vector<64x128xf32> -> vector<64x384xf32>
    %cst_18 = arith.constant dense<0.000000e+00> : vector<64x128xf32>
    %31 = tpu.matmul %30, %23, %cst_18 {dimension_numbers = #tpu.dot_dimension_numbers<[1], [0], [0], [1], [0, 0, 1, 1], [], []>} : vector<64x384xf32>, vector<384x128xf32>, vector<64x128xf32> -> vector<64x128xf32>
    %c0_19 = arith.constant 0 : index
    %c0_20 = arith.constant 0 : index
    %32 = vector.load %arg9[%c0_19, %c0_20] : memref<1x128xf32, #tpu.memory_space<vmem>>, vector<1x128xf32>
    %33 = vector.broadcast %32 : vector<1x128xf32> to vector<64x128xf32>
    %34 = arith.addf %31, %33 : vector<64x128xf32>
    %35 = arith.addf %0, %34 : vector<64x128xf32>
    %c0_21 = arith.constant 0 : index
    %c0_22 = arith.constant 0 : index
    %36 = vector.load %arg10[%c0_21, %c0_22] : memref<64x128xf32, #tpu.memory_space<vmem>>, vector<64x128xf32>
    tpu.vector_store %arg10[%c0_21, %c0_22], %35 {strides = array<i32>} : memref<64x128xf32, #tpu.memory_space<vmem>>, vector<64x128xf32>,
    return
  }
  func.func @transform_0(%arg0: i32) -> (i32, i32) {
    %c0_i32 = arith.constant 0 : i32
    %c0_i32_0 = arith.constant 0 : i32
    return %arg0, %c0_i32 : i32, i32
  }
  func.func @transform_1(%arg0: i32) -> (i32, i32) {
    %c0_i32 = arith.constant 0 : i32
    %c0_i32_0 = arith.constant 0 : i32
    %c0_i32_1 = arith.constant 0 : i32
    return %c0_i32, %c0_i32_0 : i32, i32
  }
  func.func @transform_2(%arg0: i32) -> (i32, i32) {
    %c0_i32 = arith.constant 0 : i32
    %c0_i32_0 = arith.constant 0 : i32
    %c0_i32_1 = arith.constant 0 : i32
    return %c0_i32, %c0_i32_0 : i32, i32
  }
  func.func @transform_3(%arg0: i32) -> (i32, i32) {
    %c0_i32 = arith.constant 0 : i32
    %c0_i32_0 = arith.constant 0 : i32
    %c0_i32_1 = arith.constant 0 : i32
    return %c0_i32, %c0_i32_0 : i32, i32
  }
  func.func @transform_4(%arg0: i32) -> (i32, i32) {
    %c0_i32 = arith.constant 0 : i32
    %c0_i32_0 = arith.constant 0 : i32
    %c0_i32_1 = arith.constant 0 : i32
    return %c0_i32, %c0_i32_0 : i32, i32
  }
  func.func @transform_5(%arg0: i32) -> (i32, i32) {
    %c0_i32 = arith.constant 0 : i32
    %c0_i32_0 = arith.constant 0 : i32
    %c0_i32_1 = arith.constant 0 : i32
    return %c0_i32, %c0_i32_0 : i32, i32
  }
  func.func @transform_6(%arg0: i32) -> (i32, i32) {
    %c0_i32 = arith.constant 0 : i32
    %c0_i32_0 = arith.constant 0 : i32
    %c0_i32_1 = arith.constant 0 : i32
    return %c0_i32, %c0_i32_0 : i32, i32
  }
  func.func @transform_7(%arg0: i32) -> (i32, i32) {
    %c0_i32 = arith.constant 0 : i32
    %c0_i32_0 = arith.constant 0 : i32
    %c0_i32_1 = arith.constant 0 : i32
    return %c0_i32, %c0_i32_0 : i32, i32
  }
  func.func @transform_8(%arg0: i32) -> (i32, i32) {
    %c0_i32 = arith.constant 0 : i32
    %c0_i32_0 = arith.constant 0 : i32
    %c0_i32_1 = arith.constant 0 : i32
    return %c0_i32, %c0_i32_0 : i32, i32
  }
  func.func @transform_9(%arg0: i32) -> (i32, i32) {
    %c0_i32 = arith.constant 0 : i32
    %c0_i32_0 = arith.constant 0 : i32
    return %arg0, %c0_i32 : i32, i32
  }
}

</mosaic_0001>

<llo_original>
// kernel: tpu_custom_call.1
$region0: #{tpu_custom_call.1}
  #allocation0 [shape = 'u32[]', space=smem, size = 0x4, offset = 0x4, fixed_abs, tag = 'smem constant byte address 0x4 - core index']
  #allocation1 [shape = 'u32[144,128]{1,0:T(1,128)}', space=vmem, size = 0x12000, scoped, tag = 'internal scratch']
  %s0 = inlined_call_operand.vmem [shape: f32[64,128], index: 0, kind: input, shape index: {}]
  %s1 = inlined_call_operand.vmem [shape: f32[1,128], index: 1, kind: input, shape index: {}]
  %s2 = inlined_call_operand.vmem [shape: f32[1,128], index: 2, kind: input, shape index: {}]
  %s3 = inlined_call_operand.vmem [shape: f32[64,1], index: 3, kind: input, shape index: {}]
  %s4 = inlined_call_operand.vmem [shape: f32[64,1], index: 4, kind: input, shape index: {}]
  %s5 = inlined_call_operand.hbm [shape: f32[384,128], index: 5, kind: input, shape index: {}]
  %s6 = inlined_call_operand.vmem [shape: f32[1,128], index: 6, kind: input, shape index: {}]
  %s7 = inlined_call_operand.hbm [shape: f32[384,128], index: 7, kind: input, shape index: {}]
  %s8 = inlined_call_operand.vmem [shape: f32[1,128], index: 8, kind: input, shape index: {}]
  %s9 = inlined_call_operand.hbm [shape: f32[64,128], index: 9, kind: output, shape index: {}]
  %s10 = sld [smem:[#allocation0]]
  $region54: #{tpu_custom_call.1} parent=0
    _
  %s12 = ssub.s32 1, %s10
  %s13 = scalar_select 0, %s12, %s10
  $region1: #{tpu_custom_call.1} parent=0
    #allocation2 [shape = 'u8[196608]{0}', space=vmem, size = 0x30000, scoped, tag = 'input window, operand 5, single buffered']
    #allocation3 [shape = 's32[1]{0}', space=sflag, size = 0x4, scoped, tag = 'scoped memory for tpu_custom_call.1']
    #allocation4 [shape = 's32[1]{0}', space=sflag, size = 0x4, scoped, tag = 'scoped memory for tpu_custom_call.1']
    #allocation5 [shape = 'u8[196608]{0}', space=vmem, size = 0x30000, scoped, tag = 'input window, operand 7, single buffered']
    #allocation6 [shape = 's32[1]{0}', space=sflag, size = 0x4, scoped, tag = 'scoped memory for tpu_custom_call.1']
    #allocation7 [shape = 'u8[32768]{0}', space=vmem, size = 0x8000, scoped, tag = 'output window, operand 0, single buffered']
    %14 = vsyncpa [#allocation3], 0
    %15 = vsyncpa [#allocation6], 0
    %16 = vsyncpa [#allocation4], 0
    // Predicated region
    $region2: #{tpu_custom_call.1} parent=1 // pred_check
      _
    $region3: #{tpu_custom_call.1} parent=1 // pred_check_branch
      %18 = sbr.rel (0) target = $region5
    $region4: #{tpu_custom_call.1} parent=1 // pred_region
      _
    $region5: #{tpu_custom_call.1} parent=1 // pred_fallthru
      _
    // Predicated region
    $region6: #{tpu_custom_call.1} parent=1 // pred_check
      _
    $region7: #{tpu_custom_call.1} parent=1 // pred_check_branch
      %20 = sbr.rel (0) target = $region9
    $region8: #{tpu_custom_call.1} parent=1 // pred_region
      _
    $region9: #{tpu_custom_call.1} parent=1 // pred_fallthru
      _
    // Predicated region
    $region10: #{tpu_custom_call.1} parent=1 // pred_check
      _
    $region11: #{tpu_custom_call.1} parent=1 // pred_check_branch
      %22 = sbr.rel (0) target = $region13
    $region12: #{tpu_custom_call.1} parent=1 // pred_region
      _
    $region13: #{tpu_custom_call.1} parent=1 // pred_fallthru
      _
    // Predicated region
    $region14: #{tpu_custom_call.1} parent=1 // pred_check
      _
    $region15: #{tpu_custom_call.1} parent=1 // pred_check_branch
      %24 = sbr.rel (0) target = $region17
    $region16: #{tpu_custom_call.1} parent=1 // pred_region
      _
    $region17: #{tpu_custom_call.1} parent=1 // pred_fallthru
      _
    // Predicated region
    $region18: #{tpu_custom_call.1} parent=1 // pred_check
      _
    $region19: #{tpu_custom_call.1} parent=1 // pred_check_branch
      %26 = sbr.rel (0) target = $region21
    $region20: #{tpu_custom_call.1} parent=1 // pred_region
      _
    $region21: #{tpu_custom_call.1} parent=1 // pred_fallthru
      _
    // Predicated region
    $region22: #{tpu_custom_call.1} parent=1 // pred_check
      _
    $region23: #{tpu_custom_call.1} parent=1 // pred_check_branch
      %28 = sbr.rel (0) target = $region25
    $region24: #{tpu_custom_call.1} parent=1 // pred_region
      %s30 = ssub.s32 6144, 6144
      %31 = vsyncadd [#allocation3], %s30
      %s32 = sshll.u32 [#allocation2], 4
      %s33 = int_to_ptr.vmem [resolvable:$true] %s32
      %38 = dma.hbm_to_vmem [thread:$0]  %s5, 6144, %s33, [#allocation3], 128, 128, 8
    $region25: #{tpu_custom_call.1} parent=1 // pred_fallthru
      _
    // Predicated region
    $region26: #{tpu_custom_call.1} parent=1 // pred_check
      _
    $region27: #{tpu_custom_call.1} parent=1 // pred_check_branch
      %40 = sbr.rel (0) target = $region29
    $region28: #{tpu_custom_call.1} parent=1 // pred_region
      _
    $region29: #{tpu_custom_call.1} parent=1 // pred_fallthru
      _
    // Predicated region
    $region30: #{tpu_custom_call.1} parent=1 // pred_check
      _
    $region31: #{tpu_custom_call.1} parent=1 // pred_check_branch
      %42 = sbr.rel (0) target = $region33
    $region32: #{tpu_custom_call.1} parent=1 // pred_region
      %s44 = ssub.s32 6144, 6144
      %45 = vsyncadd [#allocation6], %s44
      %s46 = sshll.u32 [#allocation5], 4
      %s47 = int_to_ptr.vmem [resolvable:$true] %s46
      %52 = dma.hbm_to_vmem [thread:$0]  %s7, 6144, %s47, [#allocation6], 128, 128, 8
    $region33: #{tpu_custom_call.1} parent=1 // pred_fallthru
      _
    // Predicated region
    $region34: #{tpu_custom_call.1} parent=1 // pred_check
      _
    $region35: #{tpu_custom_call.1} parent=1 // pred_check_branch
      %54 = sbr.rel (0) target = $region37
    $region36: #{tpu_custom_call.1} parent=1 // pred_region
      _
    $region37: #{tpu_custom_call.1} parent=1 // pred_fallthru
      _
    // Predicated region
    $region38: #{tpu_custom_call.1} parent=1 // pred_check
      _
    $region39: #{tpu_custom_call.1} parent=1 // pred_check_branch
      %56 = sbr.rel (0) target = $region41
    $region40: #{tpu_custom_call.1} parent=1 // pred_region
      %57 = dma.done [#allocation3], 6144
    $region41: #{tpu_custom_call.1} parent=1 // pred_fallthru
      _
    // Predicated region
    $region42: #{tpu_custom_call.1} parent=1 // pred_check
      _
    $region43: #{tpu_custom_call.1} parent=1 // pred_check_branch
      %59 = sbr.rel (0) target = $region45
    $region44: #{tpu_custom_call.1} parent=1 // pred_region
      %60 = dma.done [#allocation6], 6144
    $region45: #{tpu_custom_call.1} parent=1 // pred_fallthru
      _
    %v61 = vld [vmem:[%s0] sm:$0xff]
    %v62 = vld [vmem:[%s0 + $0x8] sm:$0xff]
    %v63 = vld [vmem:[%s0 + $0x10] sm:$0xff]
    %v64 = vld [vmem:[%s0 + $0x18] sm:$0xff]
    %v65 = vld [vmem:[%s0 + $0x20] sm:$0xff]
    %v66 = vld [vmem:[%s0 + $0x28] sm:$0xff]
    %v67 = vld [vmem:[%s0 + $0x30] sm:$0xff]
    %v68 = vld [vmem:[%s0 + $0x38] sm:$0xff]
    %v69 = vld [vmem:[%s1] sm:$0x1]
    %v71 = vlaneseq
    %v72 = vshrl.u32 %v71, 7
    %v73 = vsub.s32 0, %v72
    %v74 = vrot.slane %v69, %v73
    %v76 = vmul.f32 %v61, %v74
    %v77 = vmul.f32 %v62, %v74
    %v78 = vmul.f32 %v63, %v74
    %v79 = vmul.f32 %v64, %v74
    %v80 = vmul.f32 %v65, %v74
    %v81 = vmul.f32 %v66, %v74
    %v82 = vmul.f32 %v67, %v74
    %v83 = vmul.f32 %v68, %v74
    %v84 = vld [vmem:[%s2] sm:$0x1]
    %v86 = vlaneseq
    %v87 = vshrl.u32 %v86, 7
    %v88 = vsub.s32 0, %v87
    %v89 = vrot.slane %v84, %v88
    %v91 = vadd.f32 %v76, %v89
    %v92 = vadd.f32 %v77, %v89
    %v93 = vadd.f32 %v78, %v89
    %v94 = vadd.f32 %v79, %v89
    %v95 = vadd.f32 %v80, %v89
    %v96 = vadd.f32 %v81, %v89
    %v97 = vadd.f32 %v82, %v89
    %v98 = vadd.f32 %v83, %v89
    %v99 = vld [vmem:[%s3] sm:$0xff]
    %v100 = vld [vmem:[%s3 + $0x8] sm:$0xff]
    %v101 = vld [vmem:[%s3 + $0x10] sm:$0xff]
    %v102 = vld [vmem:[%s3 + $0x18] sm:$0xff]
    %v103 = vld [vmem:[%s3 + $0x20] sm:$0xff]
    %v104 = vld [vmem:[%s3 + $0x28] sm:$0xff]
    %v105 = vld [vmem:[%s3 + $0x30] sm:$0xff]
    %v106 = vld [vmem:[%s3 + $0x38] sm:$0xff]
    %v107 = vld [vmem:[%s4] sm:$0xff]
    %v108 = vld [vmem:[%s4 + $0x8] sm:$0xff]
    %v109 = vld [vmem:[%s4 + $0x10] sm:$0xff]
    %v110 = vld [vmem:[%s4 + $0x18] sm:$0xff]
    %v111 = vld [vmem:[%s4 + $0x20] sm:$0xff]
    %v112 = vld [vmem:[%s4 + $0x28] sm:$0xff]
    %v113 = vld [vmem:[%s4 + $0x30] sm:$0xff]
    %v114 = vld [vmem:[%s4 + $0x38] sm:$0xff]
    %v115 = vld [vmem:[#allocation2] sm:$0xff]
    %v116 = vld [vmem:[#allocation2 + $0x8] sm:$0xff]
    %v117 = vld [vmem:[#allocation2 + $0x10] sm:$0xff]
    %v118 = vld [vmem:[#allocation2 + $0x18] sm:$0xff]
    %v119 = vld [vmem:[#allocation2 + $0x20] sm:$0xff]
    %v120 = vld [vmem:[#allocation2 + $0x28] sm:$0xff]
    %v121 = vld [vmem:[#allocation2 + $0x30] sm:$0xff]
    %v122 = vld [vmem:[#allocation2 + $0x38] sm:$0xff]
    %v123 = vld [vmem:[#allocation2 + $0x40] sm:$0xff]
    %v124 = vld [vmem:[#allocation2 + $0x48] sm:$0xff]
    %v125 = vld [vmem:[#allocation2 + $0x50] sm:$0xff]
    %v126 = vld [vmem:[#allocation2 + $0x58] sm:$0xff]
    %v127 = vld [vmem:[#allocation2 + $0x60] sm:$0xff]
    %v128 = vld [vmem:[#allocation2 + $0x68] sm:$0xff]
    %v129 = vld [vmem:[#allocation2 + $0x70] sm:$0xff]
    %v130 = vld [vmem:[#allocation2 + $0x78] sm:$0xff]
    %v131 = vld [vmem:[#allocation2 + $0x80] sm:$0xff]
    %v132 = vld [vmem:[#allocation2 + $0x88] sm:$0xff]
    %v133 = vld [vmem:[#allocation2 + $0x90] sm:$0xff]
    %v134 = vld [vmem:[#allocation2 + $0x98] sm:$0xff]
    %v135 = vld [vmem:[#allocation2 + $0xa0] sm:$0xff]
    %v136 = vld [vmem:[#allocation2 + $0xa8] sm:$0xff]
    %v137 = vld [vmem:[#allocation2 + $0xb0] sm:$0xff]
    %v138 = vld [vmem:[#allocation2 + $0xb8] sm:$0xff]
    %v139 = vld [vmem:[#allocation2 + $0xc0] sm:$0xff]
    %v140 = vld [vmem:[#allocation2 + $0xc8] sm:$0xff]
    %v141 = vld [vmem:[#allocation2 + $0xd0] sm:$0xff]
    %v142 = vld [vmem:[#allocation2 + $0xd8] sm:$0xff]
    %v143 = vld [vmem:[#allocation2 + $0xe0] sm:$0xff]
    %v144 = vld [vmem:[#allocation2 + $0xe8] sm:$0xff]
    %v145 = vld [vmem:[#allocation2 + $0xf0] sm:$0xff]
    %v146 = vld [vmem:[#allocation2 + $0xf8] sm:$0xff]
    %v147 = vld [vmem:[#allocation2 + $0x100] sm:$0xff]
    %v148 = vld [vmem:[#allocation2 + $0x108] sm:$0xff]
    %v149 = vld [vmem:[#allocation2 + $0x110] sm:$0xff]
    %v150 = vld [vmem:[#allocation2 + $0x118] sm:$0xff]
    %v151 = vld [vmem:[#allocation2 + $0x120] sm:$0xff]
    %v152 = vld [vmem:[#allocation2 + $0x128] sm:$0xff]
    %v153 = vld [vmem:[#allocation2 + $0x130] sm:$0xff]
    %v154 = vld [vmem:[#allocation2 + $0x138] sm:$0xff]
    %v155 = vld [vmem:[#allocation2 + $0x140] sm:$0xff]
    %v156 = vld [vmem:[#allocation2 + $0x148] sm:$0xff]
    %v157 = vld [vmem:[#allocation2 + $0x150] sm:$0xff]
    %v158 = vld [vmem:[#allocation2 + $0x158] sm:$0xff]
    %v159 = vld [vmem:[#allocation2 + $0x160] sm:$0xff]
    %v160 = vld [vmem:[#allocation2 + $0x168] sm:$0xff]
    %v161 = vld [vmem:[#allocation2 + $0x170] sm:$0xff]
    %v162 = vld [vmem:[#allocation2 + $0x178] sm:$0xff]
    %v163 = vrot.slane %v91, 7
    %v164 = vrot.slane %v92, 7
    %v165 = vrot.slane %v93, 7
    %v166 = vrot.slane %v94, 7
    %v167 = vrot.slane %v95, 7
    %v168 = vrot.slane %v96, 7
    %v169 = vrot.slane %v97, 7
    %v170 = vrot.slane %v98, 7
    %v171 = vlaneseq
    %v172 = vshrl.u32 %v171, 7
    %vm173 = vcmp.lt.s32.totalorder %v172, 1
    %v174 = vsel %vm173, %v169, %v170
    %v175 = vsel %vm173, %v168, %v169
    %v176 = vsel %vm173, %v167, %v168
    %v177 = vsel %vm173, %v166, %v167
    %v178 = vsel %vm173, %v165, %v166
    %v179 = vsel %vm173, %v164, %v165
    %v180 = vsel %vm173, %v163, %v164
    %v181 = vsel %vm173, %v170, %v163
    %183 = vset.pattern.permute.xlu0 0
    %184 = vperm.xlu0 %183, %v99
    %v185 = vpop.permute.xlu0 %184
    %188 = vset.pattern.permute.xlu0 0
    %189 = vperm.xlu0 %188, %v100
    %v190 = vpop.permute.xlu0 %189
    %193 = vset.pattern.permute.xlu0 0
    %194 = vperm.xlu0 %193, %v101
    %v195 = vpop.permute.xlu0 %194
    %198 = vset.pattern.permute.xlu0 0
    %199 = vperm.xlu0 %198, %v102
    %v200 = vpop.permute.xlu0 %199
    %203 = vset.pattern.permute.xlu0 0
    %204 = vperm.xlu0 %203, %v103
    %v205 = vpop.permute.xlu0 %204
    %208 = vset.pattern.permute.xlu0 0
    %209 = vperm.xlu0 %208, %v104
    %v210 = vpop.permute.xlu0 %209
    %213 = vset.pattern.permute.xlu0 0
    %214 = vperm.xlu0 %213, %v105
    %v215 = vpop.permute.xlu0 %214
    %218 = vset.pattern.permute.xlu0 0
    %219 = vperm.xlu0 %218, %v106
    %v220 = vpop.permute.xlu0 %219
    %v222 = vmul.f32 %v181, %v185
    %v223 = vmul.f32 %v180, %v190
    %v224 = vmul.f32 %v179, %v195
    %v225 = vmul.f32 %v178, %v200
    %v226 = vmul.f32 %v177, %v205
    %v227 = vmul.f32 %v176, %v210
    %v228 = vmul.f32 %v175, %v215
    %v229 = vmul.f32 %v174, %v220
    %v230 = vrot.slane %v91, 1
    %v231 = vrot.slane %v92, 1
    %v232 = vrot.slane %v93, 1
    %v233 = vrot.slane %v94, 1
    %v234 = vrot.slane %v95, 1
    %v235 = vrot.slane %v96, 1
    %v236 = vrot.slane %v97, 1
    %v237 = vrot.slane %v98, 1
    %vm238 = vcmp.lt.s32.totalorder %v172, 7
    %v239 = vsel %vm238, %v236, %v237
    %v240 = vsel %vm238, %v235, %v236
    %v241 = vsel %vm238, %v234, %v235
    %v242 = vsel %vm238, %v233, %v234
    %v243 = vsel %vm238, %v232, %v233
    %v244 = vsel %vm238, %v231, %v232
    %v245 = vsel %vm238, %v230, %v231
    %v246 = vsel %vm238, %v237, %v230
    %248 = vset.pattern.permute.xlu0 0
    %249 = vperm.xlu0 %248, %v107
    %v250 = vpop.permute.xlu0 %249
    %253 = vset.pattern.permute.xlu0 0
    %254 = vperm.xlu0 %253, %v108
    %v255 = vpop.permute.xlu0 %254
    %258 = vset.pattern.permute.xlu0 0
    %259 = vperm.xlu0 %258, %v109
    %v260 = vpop.permute.xlu0 %259
    %263 = vset.pattern.permute.xlu0 0
    %264 = vperm.xlu0 %263, %v110
    %v265 = vpop.permute.xlu0 %264
    %268 = vset.pattern.permute.xlu0 0
    %269 = vperm.xlu0 %268, %v111
    %v270 = vpop.permute.xlu0 %269
    %273 = vset.pattern.permute.xlu0 0
    %274 = vperm.xlu0 %273, %v112
    %v275 = vpop.permute.xlu0 %274
    %278 = vset.pattern.permute.xlu0 0
    %279 = vperm.xlu0 %278, %v113
    %v280 = vpop.permute.xlu0 %279
    %283 = vset.pattern.permute.xlu0 0
    %284 = vperm.xlu0 %283, %v114
    %v285 = vpop.permute.xlu0 %284
    %v287 = vmul.f32 %v245, %v250
    %v288 = vmul.f32 %v244, %v255
    %v289 = vmul.f32 %v243, %v260
    %v290 = vmul.f32 %v242, %v265
    %v291 = vmul.f32 %v241, %v270
    %v292 = vmul.f32 %v240, %v275
    %v293 = vmul.f32 %v239, %v280
    %v294 = vmul.f32 %v246, %v285
    %v295 = vld [vmem:[%s6] sm:$0x1]
    %v297 = vlaneseq
    %v298 = vshrl.u32 %v297, 7
    %v299 = vsub.s32 0, %v298
    %v300 = vrot.slane %v295, %v299
    %302 = vmatprep.subr.mxu0 0.0
    %303 = vmatpush1.msra.mxu0 %v130
    %304 = vmatprep.subr.mxu0 0.0
    %305 = vmatpush1.msra.mxu0 %v129
    %306 = vmatprep.subr.mxu0 0.0
    %307 = vmatpush1.msra.mxu0 %v128
    %308 = vmatprep.subr.mxu0 0.0
    %309 = vmatpush1.msra.mxu0 %v127
    %310 = vmatprep.subr.mxu0 0.0
    %311 = vmatpush1.msra.mxu0 %v126
    %312 = vmatprep.subr.mxu0 0.0
    %313 = vmatpush1.msra.mxu0 %v125
    %314 = vmatprep.subr.mxu0 0.0
    %315 = vmatpush1.msra.mxu0 %v124
    %316 = vmatprep.subr.mxu0 0.0
    %317 = vmatpush1.msra.mxu0 %v123
    %318 = vmatprep.subr.mxu0 0.0
    %319 = vmatpush1.msra.mxu0 %v122
    %320 = vmatprep.subr.mxu0 0.0
    %321 = vmatpush1.msra.mxu0 %v121
    %322 = vmatprep.subr.mxu0 0.0
    %323 = vmatpush1.msra.mxu0 %v120
    %324 = vmatprep.subr.mxu0 0.0
    %325 = vmatpush1.msra.mxu0 %v119
    %326 = vmatprep.subr.mxu0 0.0
    %327 = vmatpush1.msra.mxu0 %v118
    %328 = vmatprep.subr.mxu0 0.0
    %329 = vmatpush1.msra.mxu0 %v117
    %330 = vmatprep.subr.mxu0 0.0
    %331 = vmatpush1.msra.mxu0 %v116
    %332 = vmatprep.subr.mxu0 0.0
    %333 = vmatpush1.msra.mxu0 %v115
    %334 = vmatprep.subr.mxu0 0.0
    %335 = vmatpush2.msra.mxu0 %v146
    %336 = vmatprep.subr.mxu0 0.0
    %337 = vmatpush2.msra.mxu0 %v145
    %338 = vmatprep.subr.mxu0 0.0
    %339 = vmatpush2.msra.mxu0 %v144
    %340 = vmatprep.subr.mxu0 0.0
    %341 = vmatpush2.msra.mxu0 %v143
    %342 = vmatprep.subr.mxu0 0.0
    %343 = vmatpush2.msra.mxu0 %v142
    %344 = vmatprep.subr.mxu0 0.0
    %345 = vmatpush2.msra.mxu0 %v141
    %346 = vmatprep.subr.mxu0 0.0
    %347 = vmatpush2.msra.mxu0 %v140
    %348 = vmatprep.subr.mxu0 0.0
    %349 = vmatpush2.msra.mxu0 %v139
    %350 = vmatprep.subr.mxu0 0.0
    %351 = vmatpush2.msra.mxu0 %v138
    %352 = vmatprep.subr.mxu0 0.0
    %353 = vmatpush2.msra.mxu0 %v137
    %354 = vmatprep.subr.mxu0 0.0
    %355 = vmatpush2.msra.mxu0 %v136
    %356 = vmatprep.subr.mxu0 0.0
    %357 = vmatpush2.msra.mxu0 %v135
    %358 = vmatprep.subr.mxu0 0.0
    %359 = vmatpush2.msra.mxu0 %v134
    %360 = vmatprep.subr.mxu0 0.0
    %361 = vmatpush2.msra.mxu0 %v133
    %362 = vmatprep.subr.mxu0 0.0
    %363 = vmatpush2.msra.mxu0 %v132
    %364 = vmatprep.subr.mxu0 0.0
    %365 = vmatpush2.msra.mxu0 %v131
    %366 = vmatprep.mubr.f32.mxu0 %v91
    %367 = vmatmul.mubr.f32.gmra.mxu0 %v222
    %v368 = vpop.f32.mrf.mxu0
    %v369 = vadd.f32 %v300, %v368
    %v370 = vpop.f32.mrf.mxu0
    %371 = vmatprep.mubr.f32.mxu0 %v92
    %372 = vmatmul.mubr.f32.gmra.mxu0 %v223
    %v373 = vpop.f32.mrf.mxu0
    %v374 = vadd.f32 %v300, %v373
    %v375 = vpop.f32.mrf.mxu0
    %376 = vmatprep.mubr.f32.mxu0 %v93
    %377 = vmatmul.mubr.f32.gmra.mxu0 %v224
    %v378 = vpop.f32.mrf.mxu0
    %v379 = vadd.f32 %v300, %v378
    %v380 = vpop.f32.mrf.mxu0
    %381 = vmatprep.mubr.f32.mxu0 %v94
    %382 = vmatmul.mubr.f32.gmra.mxu0 %v225
    %v383 = vpop.f32.mrf.mxu0
    %v384 = vadd.f32 %v300, %v383
    %v385 = vpop.f32.mrf.mxu0
    %386 = vmatprep.mubr.f32.mxu0 %v95
    %387 = vmatmul.mubr.f32.gmra.mxu0 %v226
    %v388 = vpop.f32.mrf.mxu0
    %v389 = vadd.f32 %v300, %v388
    %v390 = vpop.f32.mrf.mxu0
    %391 = vmatprep.mubr.f32.mxu0 %v96
    %392 = vmatmul.mubr.f32.gmra.mxu0 %v227
    %v393 = vpop.f32.mrf.mxu0
    %v394 = vadd.f32 %v300, %v393
    %v395 = vpop.f32.mrf.mxu0
    %396 = vmatprep.mubr.f32.mxu0 %v97
    %397 = vmatmul.mubr.f32.gmra.mxu0 %v228
    %v398 = vpop.f32.mrf.mxu0
    %v399 = vadd.f32 %v300, %v398
    %v400 = vpop.f32.mrf.mxu0
    %401 = vmatprep.mubr.f32.mxu0 %v98
    %402 = vmatmul.mubr.f32.gmra.mxu0 %v229
    %v403 = vpop.f32.mrf.mxu0
    %v404 = vadd.f32 %v300, %v403
    %v405 = vpop.f32.mrf.mxu0
    %406 = vdwg.mxu0
    %407 = vmatprep.subr.mxu0 0.0
    %408 = vmatpush1.msra.mxu0 %v162
    %409 = vmatprep.subr.mxu0 0.0
    %410 = vmatpush1.msra.mxu0 %v161
    %411 = vmatprep.subr.mxu0 0.0
    %412 = vmatpush1.msra.mxu0 %v160
    %413 = vmatprep.subr.mxu0 0.0
    %414 = vmatpush1.msra.mxu0 %v159
    %415 = vmatprep.subr.mxu0 0.0
    %416 = vmatpush1.msra.mxu0 %v158
    %417 = vmatprep.subr.mxu0 0.0
    %418 = vmatpush1.msra.mxu0 %v157
    %419 = vmatprep.subr.mxu0 0.0
    %420 = vmatpush1.msra.mxu0 %v156
    %421 = vmatprep.subr.mxu0 0.0
    %422 = vmatpush1.msra.mxu0 %v155
    %423 = vmatprep.subr.mxu0 0.0
    %424 = vmatpush1.msra.mxu0 %v154
    %425 = vmatprep.subr.mxu0 0.0
    %426 = vmatpush1.msra.mxu0 %v153
    %427 = vmatprep.subr.mxu0 0.0
    %428 = vmatpush1.msra.mxu0 %v152
    %429 = vmatprep.subr.mxu0 0.0
    %430 = vmatpush1.msra.mxu0 %v151
    %431 = vmatprep.subr.mxu0 0.0
    %432 = vmatpush1.msra.mxu0 %v150
    %433 = vmatprep.subr.mxu0 0.0
    %434 = vmatpush1.msra.mxu0 %v149
    %435 = vmatprep.subr.mxu0 0.0
    %436 = vmatpush1.msra.mxu0 %v148
    %437 = vmatprep.subr.mxu0 0.0
    %438 = vmatpush1.msra.mxu0 %v147
    %439 = vmatprep.subr.mxu0 0.0
    %440 = vmatpush2.msra.mxu0 0.0
    %441 = vmatprep.subr.mxu0 0.0
    %442 = vmatpush2.msra.mxu0 0.0
    %443 = vmatprep.subr.mxu0 0.0
    %444 = vmatpush2.msra.mxu0 0.0
    %445 = vmatprep.subr.mxu0 0.0
    %446 = vmatpush2.msra.mxu0 0.0
    %447 = vmatprep.subr.mxu0 0.0
    %448 = vmatpush2.msra.mxu0 0.0
    %449 = vmatprep.subr.mxu0 0.0
    %450 = vmatpush2.msra.mxu0 0.0
    %451 = vmatprep.subr.mxu0 0.0
    %452 = vmatpush2.msra.mxu0 0.0
    %453 = vmatprep.subr.mxu0 0.0
    %454 = vmatpush2.msra.mxu0 0.0
    %455 = vmatprep.subr.mxu0 0.0
    %456 = vmatpush2.msra.mxu0 0.0
    %457 = vmatprep.subr.mxu0 0.0
    %458 = vmatpush2.msra.mxu0 0.0
    %459 = vmatprep.subr.mxu0 0.0
    %460 = vmatpush2.msra.mxu0 0.0
    %461 = vmatprep.subr.mxu0 0.0
    %462 = vmatpush2.msra.mxu0 0.0
    %463 = vmatprep.subr.mxu0 0.0
    %464 = vmatpush2.msra.mxu0 0.0
    %465 = vmatprep.subr.mxu0 0.0
    %466 = vmatpush2.msra.mxu0 0.0
    %467 = vmatprep.subr.mxu0 0.0
    %468 = vmatpush2.msra.mxu0 0.0
    %469 = vmatprep.subr.mxu0 0.0
    %470 = vmatpush2.msra.mxu0 0.0
    %471 = vmatprep.mubr.f32.mxu0 0.0
    %472 = vmatmul.mubr.f32.gmra.mxu0 %v287
    %v473 = vpop.f32.mrf.mxu0
    %v474 = vadd.f32 %v369, %v473
    %v475 = vpop.f32.mrf.mxu0
    %476 = vmatprep.mubr.f32.mxu0 0.0
    %477 = vmatmul.mubr.f32.gmra.mxu0 %v288
    %v478 = vpop.f32.mrf.mxu0
    %v479 = vadd.f32 %v374, %v478
    %v480 = vpop.f32.mrf.mxu0
    %481 = vmatprep.mubr.f32.mxu0 0.0
    %482 = vmatmul.mubr.f32.gmra.mxu0 %v289
    %v483 = vpop.f32.mrf.mxu0
    %v484 = vadd.f32 %v379, %v483
    %v485 = vpop.f32.mrf.mxu0
    %486 = vmatprep.mubr.f32.mxu0 0.0
    %487 = vmatmul.mubr.f32.gmra.mxu0 %v290
    %v488 = vpop.f32.mrf.mxu0
    %v489 = vadd.f32 %v384, %v488
    %v490 = vpop.f32.mrf.mxu0
    %491 = vmatprep.mubr.f32.mxu0 0.0
    %492 = vmatmul.mubr.f32.gmra.mxu0 %v291
    %v493 = vpop.f32.mrf.mxu0
    %v494 = vadd.f32 %v389, %v493
    %v495 = vpop.f32.mrf.mxu0
    %496 = vmatprep.mubr.f32.mxu0 0.0
    %497 = vmatmul.mubr.f32.gmra.mxu0 %v292
    %v498 = vpop.f32.mrf.mxu0
    %v499 = vadd.f32 %v394, %v498
    %v500 = vpop.f32.mrf.mxu0
    %501 = vmatprep.mubr.f32.mxu0 0.0
    %502 = vmatmul.mubr.f32.gmra.mxu0 %v293
    %v503 = vpop.f32.mrf.mxu0
    %v504 = vadd.f32 %v399, %v503
    %v505 = vpop.f32.mrf.mxu0
    %506 = vmatprep.mubr.f32.mxu0 0.0
    %507 = vmatmul.mubr.f32.gmra.mxu0 %v294
    %v508 = vpop.f32.mrf.mxu0
    %v509 = vadd.f32 %v404, %v508
    %v510 = vpop.f32.mrf.mxu0
    %511 = vdwg.mxu0
    %v512 = vmax.f32 %v474, 0.0
    %v513 = vmax.f32 %v479, 0.0
    %v514 = vmax.f32 %v484, 0.0
    %v515 = vmax.f32 %v489, 0.0
    %v516 = vmax.f32 %v494, 0.0
    %v517 = vmax.f32 %v499, 0.0
    %v518 = vmax.f32 %v504, 0.0
    %v519 = vmax.f32 %v509, 0.0
    %v520 = vld [vmem:[#allocation5] sm:$0xff]
    %v521 = vld [vmem:[#allocation5 + $0x8] sm:$0xff]
    %v522 = vld [vmem:[#allocation5 + $0x10] sm:$0xff]
    %v523 = vld [vmem:[#allocation5 + $0x18] sm:$0xff]
    %v524 = vld [vmem:[#allocation5 + $0x20] sm:$0xff]
    %v525 = vld [vmem:[#allocation5 + $0x28] sm:$0xff]
    %v526 = vld [vmem:[#allocation5 + $0x30] sm:$0xff]
    %v527 = vld [vmem:[#allocation5 + $0x38] sm:$0xff]
    %v528 = vld [vmem:[#allocation5 + $0x40] sm:$0xff]
    %v529 = vld [vmem:[#allocation5 + $0x48] sm:$0xff]
    %v530 = vld [vmem:[#allocation5 + $0x50] sm:$0xff]
    %v531 = vld [vmem:[#allocation5 + $0x58] sm:$0xff]
    %v532 = vld [vmem:[#allocation5 + $0x60] sm:$0xff]
    %v533 = vld [vmem:[#allocation5 + $0x68] sm:$0xff]
    %v534 = vld [vmem:[#allocation5 + $0x70] sm:$0xff]
    %v535 = vld [vmem:[#allocation5 + $0x78] sm:$0xff]
    %v536 = vld [vmem:[#allocation5 + $0x80] sm:$0xff]
    %v537 = vld [vmem:[#allocation5 + $0x88] sm:$0xff]
    %v538 = vld [vmem:[#allocation5 + $0x90] sm:$0xff]
    %v539 = vld [vmem:[#allocation5 + $0x98] sm:$0xff]
    %v540 = vld [vmem:[#allocation5 + $0xa0] sm:$0xff]
    %v541 = vld [vmem:[#allocation5 + $0xa8] sm:$0xff]
    %v542 = vld [vmem:[#allocation5 + $0xb0] sm:$0xff]
    %v543 = vld [vmem:[#allocation5 + $0xb8] sm:$0xff]
    %v544 = vld [vmem:[#allocation5 + $0xc0] sm:$0xff]
    %v545 = vld [vmem:[#allocation5 + $0xc8] sm:$0xff]
    %v546 = vld [vmem:[#allocation5 + $0xd0] sm:$0xff]
    %v547 = vld [vmem:[#allocation5 + $0xd8] sm:$0xff]
    %v548 = vld [vmem:[#allocation5 + $0xe0] sm:$0xff]
    %v549 = vld [vmem:[#allocation5 + $0xe8] sm:$0xff]
    %v550 = vld [vmem:[#allocation5 + $0xf0] sm:$0xff]
    %v551 = vld [vmem:[#allocation5 + $0xf8] sm:$0xff]
    %v552 = vld [vmem:[#allocation5 + $0x100] sm:$0xff]
    %v553 = vld [vmem:[#allocation5 + $0x108] sm:$0xff]
    %v554 = vld [vmem:[#allocation5 + $0x110] sm:$0xff]
    %v555 = vld [vmem:[#allocation5 + $0x118] sm:$0xff]
    %v556 = vld [vmem:[#allocation5 + $0x120] sm:$0xff]
    %v557 = vld [vmem:[#allocation5 + $0x128] sm:$0xff]
    %v558 = vld [vmem:[#allocation5 + $0x130] sm:$0xff]
    %v559 = vld [vmem:[#allocation5 + $0x138] sm:$0xff]
    %v560 = vld [vmem:[#allocation5 + $0x140] sm:$0xff]
    %v561 = vld [vmem:[#allocation5 + $0x148] sm:$0xff]
    %v562 = vld [vmem:[#allocation5 + $0x150] sm:$0xff]
    %v563 = vld [vmem:[#allocation5 + $0x158] sm:$0xff]
    %v564 = vld [vmem:[#allocation5 + $0x160] sm:$0xff]
    %v565 = vld [vmem:[#allocation5 + $0x168] sm:$0xff]
    %v566 = vld [vmem:[#allocation5 + $0x170] sm:$0xff]
    %v567 = vld [vmem:[#allocation5 + $0x178] sm:$0xff]
    %v568 = vrot.slane %v512, 7
    %v569 = vrot.slane %v513, 7
    %v570 = vrot.slane %v514, 7
    %v571 = vrot.slane %v515, 7
    %v572 = vrot.slane %v516, 7
    %v573 = vrot.slane %v517, 7
    %v574 = vrot.slane %v518, 7
    %v575 = vrot.slane %v519, 7
    %v576 = vsel %vm173, %v574, %v575
    %v577 = vsel %vm173, %v573, %v574
    %v578 = vsel %vm173, %v572, %v573
    %v579 = vsel %vm173, %v571, %v572
    %v580 = vsel %vm173, %v570, %v571
    %v581 = vsel %vm173, %v569, %v570
    %v582 = vsel %vm173, %v568, %v569
    %v583 = vsel %vm173, %v575, %v568
    %v584 = vmul.f32 %v583, %v185
    %v585 = vmul.f32 %v582, %v190
    %v586 = vmul.f32 %v581, %v195
    %v587 = vmul.f32 %v580, %v200
    %v588 = vmul.f32 %v579, %v205
    %v589 = vmul.f32 %v578, %v210
    %v590 = vmul.f32 %v577, %v215
    %v591 = vmul.f32 %v576, %v220
    %v592 = vrot.slane %v512, 1
    %v593 = vrot.slane %v513, 1
    %v594 = vrot.slane %v514, 1
    %v595 = vrot.slane %v515, 1
    %v596 = vrot.slane %v516, 1
    %v597 = vrot.slane %v517, 1
    %v598 = vrot.slane %v518, 1
    %v599 = vrot.slane %v519, 1
    %v600 = vsel %vm238, %v598, %v599
    %v601 = vsel %vm238, %v597, %v598
    %v602 = vsel %vm238, %v596, %v597
    %v603 = vsel %vm238, %v595, %v596
    %v604 = vsel %vm238, %v594, %v595
    %v605 = vsel %vm238, %v593, %v594
    %v606 = vsel %vm238, %v592, %v593
    %v607 = vsel %vm238, %v599, %v592
    %v608 = vmul.f32 %v606, %v250
    %v609 = vmul.f32 %v605, %v255
    %v610 = vmul.f32 %v604, %v260
    %v611 = vmul.f32 %v603, %v265
    %v612 = vmul.f32 %v602, %v270
    %v613 = vmul.f32 %v601, %v275
    %v614 = vmul.f32 %v600, %v280
    %v615 = vmul.f32 %v607, %v285
    %v616 = vld [vmem:[%s8] sm:$0x1]
    %v618 = vlaneseq
    %v619 = vshrl.u32 %v618, 7
    %v620 = vsub.s32 0, %v619
    %v621 = vrot.slane %v616, %v620
    %623 = vmatprep.subr.mxu0 0.0
    %624 = vmatpush1.msra.mxu0 %v535
    %625 = vmatprep.subr.mxu0 0.0
    %626 = vmatpush1.msra.mxu0 %v534
    %627 = vmatprep.subr.mxu0 0.0
    %628 = vmatpush1.msra.mxu0 %v533
    %629 = vmatprep.subr.mxu0 0.0
    %630 = vmatpush1.msra.mxu0 %v532
    %631 = vmatprep.subr.mxu0 0.0
    %632 = vmatpush1.msra.mxu0 %v531
    %633 = vmatprep.subr.mxu0 0.0
    %634 = vmatpush1.msra.mxu0 %v530
    %635 = vmatprep.subr.mxu0 0.0
    %636 = vmatpush1.msra.mxu0 %v529
    %637 = vmatprep.subr.mxu0 0.0
    %638 = vmatpush1.msra.mxu0 %v528
    %639 = vmatprep.subr.mxu0 0.0
    %640 = vmatpush1.msra.mxu0 %v527
    %641 = vmatprep.subr.mxu0 0.0
    %642 = vmatpush1.msra.mxu0 %v526
    %643 = vmatprep.subr.mxu0 0.0
    %644 = vmatpush1.msra.mxu0 %v525
    %645 = vmatprep.subr.mxu0 0.0
    %646 = vmatpush1.msra.mxu0 %v524
    %647 = vmatprep.subr.mxu0 0.0
    %648 = vmatpush1.msra.mxu0 %v523
    %649 = vmatprep.subr.mxu0 0.0
    %650 = vmatpush1.msra.mxu0 %v522
    %651 = vmatprep.subr.mxu0 0.0
    %652 = vmatpush1.msra.mxu0 %v521
    %653 = vmatprep.subr.mxu0 0.0
    %654 = vmatpush1.msra.mxu0 %v520
    %655 = vmatprep.subr.mxu0 0.0
    %656 = vmatpush2.msra.mxu0 %v551
    %657 = vmatprep.subr.mxu0 0.0
    %658 = vmatpush2.msra.mxu0 %v550
    %659 = vmatprep.subr.mxu0 0.0
    %660 = vmatpush2.msra.mxu0 %v549
    %661 = vmatprep.subr.mxu0 0.0
    %662 = vmatpush2.msra.mxu0 %v548
    %663 = vmatprep.subr.mxu0 0.0
    %664 = vmatpush2.msra.mxu0 %v547
    %665 = vmatprep.subr.mxu0 0.0
    %666 = vmatpush2.msra.mxu0 %v546
    %667 = vmatprep.subr.mxu0 0.0
    %668 = vmatpush2.msra.mxu0 %v545
    %669 = vmatprep.subr.mxu0 0.0
    %670 = vmatpush2.msra.mxu0 %v544
    %671 = vmatprep.subr.mxu0 0.0
    %672 = vmatpush2.msra.mxu0 %v543
    %673 = vmatprep.subr.mxu0 0.0
    %674 = vmatpush2.msra.mxu0 %v542
    %675 = vmatprep.subr.mxu0 0.0
    %676 = vmatpush2.msra.mxu0 %v541
    %677 = vmatprep.subr.mxu0 0.0
    %678 = vmatpush2.msra.mxu0 %v540
    %679 = vmatprep.subr.mxu0 0.0
    %680 = vmatpush2.msra.mxu0 %v539
    %681 = vmatprep.subr.mxu0 0.0
    %682 = vmatpush2.msra.mxu0 %v538
    %683 = vmatprep.subr.mxu0 0.0
    %684 = vmatpush2.msra.mxu0 %v537
    %685 = vmatprep.subr.mxu0 0.0
    %686 = vmatpush2.msra.mxu0 %v536
    %687 = vmatprep.mubr.f32.mxu0 %v512
    %688 = vmatmul.mubr.f32.gmra.mxu0 %v584
    %v689 = vpop.f32.mrf.mxu0
    %v690 = vadd.f32 %v621, %v689
    %v691 = vpop.f32.mrf.mxu0
    %692 = vmatprep.mubr.f32.mxu0 %v513
    %693 = vmatmul.mubr.f32.gmra.mxu0 %v585
    %v694 = vpop.f32.mrf.mxu0
    %v695 = vadd.f32 %v621, %v694
    %v696 = vpop.f32.mrf.mxu0
    %697 = vmatprep.mubr.f32.mxu0 %v514
    %698 = vmatmul.mubr.f32.gmra.mxu0 %v586
    %v699 = vpop.f32.mrf.mxu0
    %v700 = vadd.f32 %v621, %v699
    %v701 = vpop.f32.mrf.mxu0
    %702 = vmatprep.mubr.f32.mxu0 %v515
    %703 = vmatmul.mubr.f32.gmra.mxu0 %v587
    %v704 = vpop.f32.mrf.mxu0
    %v705 = vadd.f32 %v621, %v704
    %v706 = vpop.f32.mrf.mxu0
    %707 = vmatprep.mubr.f32.mxu0 %v516
    %708 = vmatmul.mubr.f32.gmra.mxu0 %v588
    %v709 = vpop.f32.mrf.mxu0
    %v710 = vadd.f32 %v621, %v709
    %v711 = vpop.f32.mrf.mxu0
    %712 = vmatprep.mubr.f32.mxu0 %v517
    %713 = vmatmul.mubr.f32.gmra.mxu0 %v589
    %v714 = vpop.f32.mrf.mxu0
    %v715 = vadd.f32 %v621, %v714
    %v716 = vpop.f32.mrf.mxu0
    %717 = vmatprep.mubr.f32.mxu0 %v518
    %718 = vmatmul.mubr.f32.gmra.mxu0 %v590
    %v719 = vpop.f32.mrf.mxu0
    %v720 = vadd.f32 %v621, %v719
    %v721 = vpop.f32.mrf.mxu0
    %722 = vmatprep.mubr.f32.mxu0 %v519
    %723 = vmatmul.mubr.f32.gmra.mxu0 %v591
    %v724 = vpop.f32.mrf.mxu0
    %v725 = vadd.f32 %v621, %v724
    %v726 = vpop.f32.mrf.mxu0
    %727 = vdwg.mxu0
    %728 = vmatprep.subr.mxu0 0.0
    %729 = vmatpush1.msra.mxu0 %v567
    %730 = vmatprep.subr.mxu0 0.0
    %731 = vmatpush1.msra.mxu0 %v566
    %732 = vmatprep.subr.mxu0 0.0
    %733 = vmatpush1.msra.mxu0 %v565
    %734 = vmatprep.subr.mxu0 0.0
    %735 = vmatpush1.msra.mxu0 %v564
    %736 = vmatprep.subr.mxu0 0.0
    %737 = vmatpush1.msra.mxu0 %v563
    %738 = vmatprep.subr.mxu0 0.0
    %739 = vmatpush1.msra.mxu0 %v562
    %740 = vmatprep.subr.mxu0 0.0
    %741 = vmatpush1.msra.mxu0 %v561
    %742 = vmatprep.subr.mxu0 0.0
    %743 = vmatpush1.msra.mxu0 %v560
    %744 = vmatprep.subr.mxu0 0.0
    %745 = vmatpush1.msra.mxu0 %v559
    %746 = vmatprep.subr.mxu0 0.0
    %747 = vmatpush1.msra.mxu0 %v558
    %748 = vmatprep.subr.mxu0 0.0
    %749 = vmatpush1.msra.mxu0 %v557
    %750 = vmatprep.subr.mxu0 0.0
    %751 = vmatpush1.msra.mxu0 %v556
    %752 = vmatprep.subr.mxu0 0.0
    %753 = vmatpush1.msra.mxu0 %v555
    %754 = vmatprep.subr.mxu0 0.0
    %755 = vmatpush1.msra.mxu0 %v554
    %756 = vmatprep.subr.mxu0 0.0
    %757 = vmatpush1.msra.mxu0 %v553
    %758 = vmatprep.subr.mxu0 0.0
    %759 = vmatpush1.msra.mxu0 %v552
    %760 = vmatprep.subr.mxu0 0.0
    %761 = vmatpush2.msra.mxu0 0.0
    %762 = vmatprep.subr.mxu0 0.0
    %763 = vmatpush2.msra.mxu0 0.0
    %764 = vmatprep.subr.mxu0 0.0
    %765 = vmatpush2.msra.mxu0 0.0
    %766 = vmatprep.subr.mxu0 0.0
    %767 = vmatpush2.msra.mxu0 0.0
    %768 = vmatprep.subr.mxu0 0.0
    %769 = vmatpush2.msra.mxu0 0.0
    %770 = vmatprep.subr.mxu0 0.0
    %771 = vmatpush2.msra.mxu0 0.0
    %772 = vmatprep.subr.mxu0 0.0
    %773 = vmatpush2.msra.mxu0 0.0
    %774 = vmatprep.subr.mxu0 0.0
    %775 = vmatpush2.msra.mxu0 0.0
    %776 = vmatprep.subr.mxu0 0.0
    %777 = vmatpush2.msra.mxu0 0.0
    %778 = vmatprep.subr.mxu0 0.0
    %779 = vmatpush2.msra.mxu0 0.0
    %780 = vmatprep.subr.mxu0 0.0
    %781 = vmatpush2.msra.mxu0 0.0
    %782 = vmatprep.subr.mxu0 0.0
    %783 = vmatpush2.msra.mxu0 0.0
    %784 = vmatprep.subr.mxu0 0.0
    %785 = vmatpush2.msra.mxu0 0.0
    %786 = vmatprep.subr.mxu0 0.0
    %787 = vmatpush2.msra.mxu0 0.0
    %788 = vmatprep.subr.mxu0 0.0
    %789 = vmatpush2.msra.mxu0 0.0
    %790 = vmatprep.subr.mxu0 0.0
    %791 = vmatpush2.msra.mxu0 0.0
    %792 = vmatprep.mubr.f32.mxu0 0.0
    %793 = vmatmul.mubr.f32.gmra.mxu0 %v608
    %v794 = vpop.f32.mrf.mxu0
    %v795 = vadd.f32 %v690, %v794
    %v796 = vpop.f32.mrf.mxu0
    %797 = vmatprep.mubr.f32.mxu0 0.0
    %798 = vmatmul.mubr.f32.gmra.mxu0 %v609
    %v799 = vpop.f32.mrf.mxu0
    %v800 = vadd.f32 %v695, %v799
    %v801 = vpop.f32.mrf.mxu0
    %802 = vmatprep.mubr.f32.mxu0 0.0
    %803 = vmatmul.mubr.f32.gmra.mxu0 %v610
    %v804 = vpop.f32.mrf.mxu0
    %v805 = vadd.f32 %v700, %v804
    %v806 = vpop.f32.mrf.mxu0
    %807 = vmatprep.mubr.f32.mxu0 0.0
    %808 = vmatmul.mubr.f32.gmra.mxu0 %v611
    %v809 = vpop.f32.mrf.mxu0
    %v810 = vadd.f32 %v705, %v809
    %v811 = vpop.f32.mrf.mxu0
    %812 = vmatprep.mubr.f32.mxu0 0.0
    %813 = vmatmul.mubr.f32.gmra.mxu0 %v612
    %v814 = vpop.f32.mrf.mxu0
    %v815 = vadd.f32 %v710, %v814
    %v816 = vpop.f32.mrf.mxu0
    %817 = vmatprep.mubr.f32.mxu0 0.0
    %818 = vmatmul.mubr.f32.gmra.mxu0 %v613
    %v819 = vpop.f32.mrf.mxu0
    %v820 = vadd.f32 %v715, %v819
    %v821 = vpop.f32.mrf.mxu0
    %822 = vmatprep.mubr.f32.mxu0 0.0
    %823 = vmatmul.mubr.f32.gmra.mxu0 %v614
    %v824 = vpop.f32.mrf.mxu0
    %v825 = vadd.f32 %v720, %v824
    %v826 = vpop.f32.mrf.mxu0
    %827 = vmatprep.mubr.f32.mxu0 0.0
    %828 = vmatmul.mubr.f32.gmra.mxu0 %v615
    %v829 = vpop.f32.mrf.mxu0
    %v830 = vadd.f32 %v725, %v829
    %v831 = vpop.f32.mrf.mxu0
    %832 = vdwg.mxu0
    %v833 = vadd.f32 %v61, %v795
    %v834 = vadd.f32 %v62, %v800
    %v835 = vadd.f32 %v63, %v805
    %v836 = vadd.f32 %v64, %v810
    %v837 = vadd.f32 %v65, %v815
    %v838 = vadd.f32 %v66, %v820
    %v839 = vadd.f32 %v67, %v825
    %v840 = vadd.f32 %v68, %v830
    %841 = vst [vmem:[#allocation7] sm:$0xff] %v833
    %842 = vst [vmem:[#allocation7 + $0x8] sm:$0xff] %v834
    %843 = vst [vmem:[#allocation7 + $0x10] sm:$0xff] %v835
    %844 = vst [vmem:[#allocation7 + $0x18] sm:$0xff] %v836
    %845 = vst [vmem:[#allocation7 + $0x20] sm:$0xff] %v837
    %846 = vst [vmem:[#allocation7 + $0x28] sm:$0xff] %v838
    %847 = vst [vmem:[#allocation7 + $0x30] sm:$0xff] %v839
    %848 = vst [vmem:[#allocation7 + $0x38] sm:$0xff] %v840
    // Predicated region
    $region46: #{tpu_custom_call.1} parent=1 // pred_check
      _
    $region47: #{tpu_custom_call.1} parent=1 // pred_check_branch
      %850 = sbr.rel (0) target = $region49
    $region48: #{tpu_custom_call.1} parent=1 // pred_region
      %s852 = ssub.s32 1024, 1024
      %853 = vsyncadd [#allocation4], %s852
      %s854 = sshll.u32 [#allocation7], 4
      %s855 = int_to_ptr.vmem [resolvable:$true] %s854
      %860 = dma.vmem_to_hbm [thread:$0]  %s855, 1024, %s9, [#allocation4], 128, 128, 8
    $region49: #{tpu_custom_call.1} parent=1 // pred_fallthru
      _
    // Predicated region
    $region50: #{tpu_custom_call.1} parent=1 // pred_check
      _
    $region51: #{tpu_custom_call.1} parent=1 // pred_check_branch
      %862 = sbr.rel (0) target = $region53
    $region52: #{tpu_custom_call.1} parent=1 // pred_region
      %863 = dma.done [#allocation4], 1024
    $region53: #{tpu_custom_call.1} parent=1 // pred_fallthru
      _
    %864 = vsyncpa [#allocation3], 1
    %865 = vsyncpa [#allocation6], 1
    %866 = vsyncpa [#allocation4], 1

</llo_original>
